<compile_context>
chip_gen: v7x
topology: tpu7x:2x2x1
jax: 0.10.0
libtpu: 0.0.40
codegen_flags: <defaults>
</compile_context>

<pallas_src>
import functools

import jax
import jax.numpy as jnp
from jax.experimental import pallas as pl
from jax.experimental.pallas import tpu as pltpu

NUM_CLASSES = 8      # len(self.generator.palette) — synthetic palette of 8 colors
IN_FEATURES = 3      # RGB
LANE = 128
SMALL_N_THRESHOLD = 8192   # below this, plain XLA GEMV beats the kernel fixed cost


def _round_up(x, m):
    return ((x + m - 1) // m) * m


def _vmem_capacity_bytes():
    """Physical VMEM of the local TPU; conservative 64 MiB fallback (v7x per-TC)."""
    try:
        info = pltpu.get_tpu_info()
        for attr in ("vmem_capacity_bytes", "vmem_bytes", "vmem_size_bytes"):
            v = getattr(info, attr, None)
            if v:
                return int(v)
    except Exception:
        pass
    return 64 << 20


_VMEM_BYTES = _vmem_capacity_bytes()

# Per-step working set ≈ 128 * TN bytes:
#   double-buffered f32 input [3→8 sublanes, TN]  = 2 * 32 * TN
#   double-buffered f32 output [8, TN]            = 2 * 32 * TN
# Budget ≤ 1/4 of physical VMEM; cap at 128K lanes (fits v7x's 64 MiB VMEM and
# keeps the grid >= 2 for very large N so both TensorCores get DMA work).
MAX_TILE_N = max(LANE, min(128 * 1024, (((_VMEM_BYTES // 4) // 128) // LANE) * LANE))
# Raise the scoped-VMEM limit above the default (16 MiB on v5e, 32 MiB on v6e/v7x).
VMEM_LIMIT_BYTES = int(min(64 << 20, _VMEM_BYTES // 2))


def linear_kernel(w_ref, b_ref, x_ref, o_ref):
    # w_ref: [P, 3]  native PyTorch layout, VMEM-resident across the grid
    # b_ref: [P, 1]  VMEM-resident, broadcasts along lanes
    # x_ref: [3, TN] batch on the lane axis
    # o_ref: [P, TN] lane-dense output tile (P = 8 sublanes)
    w = w_ref[...]
    b = b_ref[...]
    x = x_ref[...]
    # K = 3 contraction unrolled as three VPU broadcast-FMAs (no MXU).
    y = b + w[:, 0:1] * x[0:1, :]
    y = y + w[:, 1:2] * x[1:2, :]
    y = y + w[:, 2:3] * x[2:3, :]
    o_ref[...] = y  # f32 -> f32, no cast needed


@functools.partial(jax.jit, static_argnames=("force_pallas", "tile_n"))
def simple_model_forward(x, weight, bias, *, force_pallas=False, tile_n=None):
    """x: [N, 3] f32, weight: [P, 3] f32 (PyTorch layout), bias: [P] f32 -> [N, P]."""
    n = x.shape[0]
    p = weight.shape[0]

    # Small-N fast path: the pallas_call fixed cost, 128-lane padding and the
    # two layout passes dominate at DataLoader-sized batches; XLA fuses this.
    if (not force_pallas) and n < SMALL_N_THRESHOLD:
        return x @ weight.T + bias

    tn = MAX_TILE_N if tile_n is None else int(tile_n)   # must be a multiple of 128
    n_pad = _round_up(max(n, LANE), LANE)
    tn = min(tn, n_pad)

    # Single fused pad+transpose pass building the feature-major [3, n_pad] slab.
    x_t = jnp.pad(x.T, ((0, 0), (0, n_pad - n)))
    b2d = bias.reshape(p, 1)

    grid = (pl.cdiv(n_pad, tn),)   # partial last block is masked by Pallas
    y_t = pl.pallas_call(
        linear_kernel,
        out_shape=jax.ShapeDtypeStruct((p, n_pad), jnp.float32),
        grid=grid,
        in_specs=[
            # Weight & bias index_maps always return (0, 0) -> DMA'd once,
            # stay VMEM-resident for the whole grid.
            pl.BlockSpec((p, IN_FEATURES), lambda i: (0, 0)),
            pl.BlockSpec((p, 1), lambda i: (0, 0)),
            pl.BlockSpec((IN_FEATURES, tn), lambda i: (0, i)),
        ],
        out_specs=pl.BlockSpec((p, tn), lambda i: (0, i)),
        compiler_params=pltpu.CompilerParams(
            # N axis shards across both TensorCores on v7x; no-op on v5e/v6e.
            dimension_semantics=("parallel",),
            vmem_limit_bytes=VMEM_LIMIT_BYTES,
        ),
    )(weight, b2d, x_t)

    # Slice before the de-transpose so only n valid columns are moved.
    # TODO(synk): downstream (argmax / CrossEntropyLoss over P=8) could be fused
    # into the kernel or consume the [P, N] layout directly to drop this pass.
    return y_t[:, :n].T


if __name__ == "__main__":
    key = jax.random.PRNGKey(0)
    kx, kw, kb, kx2 = jax.random.split(key, 4)

    # Deterministic parameter init (mimics torch.nn.Linear uniform init bound).
    bound = 1.0 / (IN_FEATURES ** 0.5)
    weight = jax.random.uniform(
        kw, (NUM_CLASSES, IN_FEATURES), jnp.float32, minval=-bound, maxval=bound)
    bias = jax.random.uniform(
        kb, (NUM_CLASSES,), jnp.float32, minval=-bound, maxval=bound)

    # DataLoader batch (batch_size=64): exercise the Pallas path explicitly.
    x = jax.random.uniform(kx, (64, IN_FEATURES), jnp.float32)
    out = simple_model_forward(x, weight, bias, force_pallas=True)
    jax.block_until_ready(out)
    ref = x @ weight.T + bias
    assert out.shape == (64, NUM_CLASSES)
    assert jnp.allclose(out, ref, atol=1e-5, rtol=1e-5)

    # Default dispatch at N=64 takes the XLA fast path; result must match too.
    out_fast = simple_model_forward(x, weight, bias)
    jax.block_until_ready(out_fast)
    assert jnp.allclose(out_fast, ref, atol=1e-5, rtol=1e-5)

    # Multi-tile grid with a partial last block (n=2500 -> n_pad=2560, tn=1024
    # -> 3 grid steps, last one masked) + VMEM-resident weights across steps.
    x_big = jax.random.uniform(kx2, (2500, IN_FEATURES), jnp.float32)
    out_big = simple_model_forward(x_big, weight, bias, force_pallas=True, tile_n=1024)
    jax.block_until_ready(out_big)
    ref_big = x_big @ weight.T + bias
    assert out_big.shape == (2500, NUM_CLASSES)
    assert jnp.allclose(out_big, ref_big, atol=1e-5, rtol=1e-5)

    print("KERNEL_OK")
</pallas_src>

<mosaic_0001>
module attributes {stable_mosaic.version = 11 : i64} {
  func.func @linear_kernel(%arg0: i32, %arg1: memref<8x3xf32, #tpu.memory_space<vmem>>, %arg2: memref<8x1xf32, #tpu.memory_space<vmem>>, %arg3: memref<3x128xf32, #tpu.memory_space<vmem>>, %arg4: memref<8x128xf32, #tpu.memory_space<vmem>>) attributes {dimension_semantics = [#tpu.dimension_semantics<parallel>], iteration_bounds = array<i64: 1>, scalar_prefetch = 0 : i64, scratch_operands = 0 : i64, tpu.core_type = #tpu.core_type<tc>, window_params = [{pipeline_mode = #tpu.pipeline_mode<synchronous>, transform_indices = @transform_0, window_bounds = array<i64: 8, 3>}, {pipeline_mode = #tpu.pipeline_mode<synchronous>, transform_indices = @transform_1, window_bounds = array<i64: 8, 1>}, {transform_indices = @transform_2, window_bounds = array<i64: 3, 128>}, {transform_indices = @transform_3, window_bounds = array<i64: 8, 128>}]} {
    %c0 = arith.constant 0 : index
    %c0_0 = arith.constant 0 : index
    %0 = vector.load %arg1[%c0, %c0_0] : memref<8x3xf32, #tpu.memory_space<vmem>>, vector<8x3xf32>
    %c0_1 = arith.constant 0 : index
    %c0_2 = arith.constant 0 : index
    %1 = vector.load %arg2[%c0_1, %c0_2] : memref<8x1xf32, #tpu.memory_space<vmem>>, vector<8x1xf32>
    %c0_3 = arith.constant 0 : index
    %c0_4 = arith.constant 0 : index
    %2 = vector.load %arg3[%c0_3, %c0_4] : memref<3x128xf32, #tpu.memory_space<vmem>>, vector<3x128xf32>
    %3 = vector.extract_strided_slice %0 {offsets = [0, 0], sizes = [8, 1], strides = [1, 1]} : vector<8x3xf32> to vector<8x1xf32>
    %4 = vector.extract_strided_slice %2 {offsets = [0, 0], sizes = [1, 128], strides = [1, 1]} : vector<3x128xf32> to vector<1x128xf32>
    %5 = vector.broadcast %3 : vector<8x1xf32> to vector<8x128xf32>
    %6 = vector.broadcast %4 : vector<1x128xf32> to vector<8x128xf32>
    %7 = arith.mulf %5, %6 : vector<8x128xf32>
    %8 = vector.broadcast %1 : vector<8x1xf32> to vector<8x128xf32>
    %9 = arith.addf %8, %7 : vector<8x128xf32>
    %10 = vector.extract_strided_slice %0 {offsets = [0, 1], sizes = [8, 1], strides = [1, 1]} : vector<8x3xf32> to vector<8x1xf32>
    %11 = vector.extract_strided_slice %2 {offsets = [1, 0], sizes = [1, 128], strides = [1, 1]} : vector<3x128xf32> to vector<1x128xf32>
    %12 = vector.broadcast %10 : vector<8x1xf32> to vector<8x128xf32>
    %13 = vector.broadcast %11 : vector<1x128xf32> to vector<8x128xf32>
    %14 = arith.mulf %12, %13 : vector<8x128xf32>
    %15 = arith.addf %9, %14 : vector<8x128xf32>
    %16 = vector.extract_strided_slice %0 {offsets = [0, 2], sizes = [8, 1], strides = [1, 1]} : vector<8x3xf32> to vector<8x1xf32>
    %17 = vector.extract_strided_slice %2 {offsets = [2, 0], sizes = [1, 128], strides = [1, 1]} : vector<3x128xf32> to vector<1x128xf32>
    %18 = vector.broadcast %16 : vector<8x1xf32> to vector<8x128xf32>
    %19 = vector.broadcast %17 : vector<1x128xf32> to vector<8x128xf32>
    %20 = arith.mulf %18, %19 : vector<8x128xf32>
    %21 = arith.addf %15, %20 : vector<8x128xf32>
    %c0_5 = arith.constant 0 : index
    %c0_6 = arith.constant 0 : index
    %22 = vector.load %arg4[%c0_5, %c0_6] : memref<8x128xf32, #tpu.memory_space<vmem>>, vector<8x128xf32>
    tpu.vector_store %arg4[%c0_5, %c0_6], %21 {strides = array<i32>} : memref<8x128xf32, #tpu.memory_space<vmem>>, vector<8x128xf32>,
    return
  }
  func.func @transform_0(%arg0: i32) -> (i32, i32) {
    %c0_i32 = arith.constant 0 : i32
    %c0_i32_0 = arith.constant 0 : i32
    %c0_i32_1 = arith.constant 0 : i32
    return %c0_i32, %c0_i32_0 : i32, i32
  }
  func.func @transform_1(%arg0: i32) -> (i32, i32) {
    %c0_i32 = arith.constant 0 : i32
    %c0_i32_0 = arith.constant 0 : i32
    %c0_i32_1 = arith.constant 0 : i32
    return %c0_i32, %c0_i32_0 : i32, i32
  }
  func.func @transform_2(%arg0: i32) -> (i32, i32) {
    %c0_i32 = arith.constant 0 : i32
    %c0_i32_0 = arith.constant 0 : i32
    return %c0_i32, %arg0 : i32, i32
  }
  func.func @transform_3(%arg0: i32) -> (i32, i32) {
    %c0_i32 = arith.constant 0 : i32
    %c0_i32_0 = arith.constant 0 : i32
    return %c0_i32, %arg0 : i32, i32
  }
}

</mosaic_0001>

<llo_original>
// kernel: simple_model_forward.1
$region0: #{simple_model_forward.1}
  #allocation0 [shape = 'u32[]', space=smem, size = 0x4, offset = 0x4, fixed_abs, tag = 'smem constant byte address 0x4 - core index']
  #allocation1 [shape = 'u32[144,128]{1,0:T(1,128)}', space=vmem, size = 0x12000, scoped, tag = 'internal scratch']
  %s0 = inlined_call_operand.vmem [shape: f32[8,3], index: 0, kind: input, shape index: {}]
  %s1 = inlined_call_operand.vmem [shape: f32[8,1], index: 1, kind: input, shape index: {}]
  %s2 = inlined_call_operand.vmem [shape: f32[3,128], index: 2, kind: input, shape index: {}]
  %s3 = inlined_call_operand.vmem [shape: f32[8,128], index: 3, kind: output, shape index: {}]
  %s4 = sld [smem:[#allocation0]]
  $region22: #{simple_model_forward.1} parent=0
    _
  %s6 = ssub.s32 1, %s4
  %s7 = scalar_select 0, %s6, %s4
  // Predicated region
  $region2: #{simple_model_forward.1} parent=0 // pred_check
    _
  $region3: #{simple_model_forward.1} parent=0 // pred_check_branch
    %9 = sbr.rel (0) target = $region5
  $region4: #{simple_model_forward.1} parent=0 // pred_region
    _
  $region5: #{simple_model_forward.1} parent=0 // pred_fallthru
    _
  // Predicated region
  $region6: #{simple_model_forward.1} parent=0 // pred_check
    _
  $region7: #{simple_model_forward.1} parent=0 // pred_check_branch
    %11 = sbr.rel (0) target = $region9
  $region8: #{simple_model_forward.1} parent=0 // pred_region
    _
  $region9: #{simple_model_forward.1} parent=0 // pred_fallthru
    _
  // Predicated region
  $region10: #{simple_model_forward.1} parent=0 // pred_check
    _
  $region11: #{simple_model_forward.1} parent=0 // pred_check_branch
    %13 = sbr.rel (0) target = $region13
  $region12: #{simple_model_forward.1} parent=0 // pred_region
    _
  $region13: #{simple_model_forward.1} parent=0 // pred_fallthru
    _
  %v14 = vld [vmem:[%s0] sm:$0xff]
  %v15 = vld [vmem:[%s1] sm:$0xff]
  %v16 = vld [vmem:[%s2] sm:$0x7]
  %18 = vset.pattern.permute.xlu0 0
  %19 = vperm.xlu0 %18, %v14
  %v20 = vpop.permute.xlu0 %19
  %v22 = vlaneseq
  %v23 = vshrl.u32 %v22, 7
  %v24 = vsub.s32 0, %v23
  %v25 = vrot.slane %v16, %v24
  %v26 = vmul.f32 %v20, %v25
  %28 = vset.pattern.permute.xlu0 0
  %29 = vperm.xlu0 %28, %v15
  %v30 = vpop.permute.xlu0 %29
  %v32 = vadd.f32 %v30, %v26
  %33 = vset.pattern.permute.xlu0 1
  %34 = vperm.xlu0 %33, %v14
  %v35 = vpop.permute.xlu0 %34
  %v37 = vlaneseq
  %v38 = vshrl.u32 %v37, 7
  %v39 = vsub.s32 1, %v38
  %v40 = vrot.slane %v16, %v39
  %v41 = vmul.f32 %v35, %v40
  %v42 = vadd.f32 %v32, %v41
  %43 = vset.pattern.permute.xlu0 2
  %44 = vperm.xlu0 %43, %v14
  %v45 = vpop.permute.xlu0 %44
  %v47 = vlaneseq
  %v48 = vshrl.u32 %v47, 7
  %v49 = vsub.s32 2, %v48
  %v50 = vrot.slane %v16, %v49
  %v51 = vmul.f32 %v45, %v50
  %v52 = vadd.f32 %v42, %v51
  %53 = vst [vmem:[%s3] sm:$0xff] %v52
  // Predicated region
  $region14: #{simple_model_forward.1} parent=0 // pred_check
    _
  $region15: #{simple_model_forward.1} parent=0 // pred_check_branch
    %55 = sbr.rel (0) target = $region17
  $region16: #{simple_model_forward.1} parent=0 // pred_region
    _
  $region17: #{simple_model_forward.1} parent=0 // pred_fallthru
    _
  // Predicated region
  $region18: #{simple_model_forward.1} parent=0 // pred_check
    _
  $region19: #{simple_model_forward.1} parent=0 // pred_check_branch
    %57 = sbr.rel (0) target = $region21
  $region20: #{simple_model_forward.1} parent=0 // pred_region
    _
  $region21: #{simple_model_forward.1} parent=0 // pred_fallthru
    _

</llo_original>
